<compile_context>
chip_gen: v7x
topology: tpu7x:2x2x1
jax: 0.10.0
libtpu: 0.0.40
codegen_flags: <defaults>
</compile_context>

<pallas_src>
import math
import functools

import jax
import jax.numpy as jnp
from jax import lax
from jax.experimental import pallas as pl
from jax.experimental.pallas import tpu as pltpu


def _round_up(a: int, b: int) -> int:
    return (a + b - 1) // b * b


def _cdiv(a: int, b: int) -> int:
    return (a + b - 1) // b


# ----------------------------- kernel bodies -----------------------------

def _gelu_partial(x_ref, w1_ref, b1_ref, w2_ref, j, th):
    """One hidden tile's f32 (tm, D) contribution of GELU(x @ W1 + b1) @ W2."""
    x = x_ref[...]
    off = pl.multiple_of(j * th, 128)
    b1 = b1_ref[:, pl.ds(off, th)]                                  # resident f32 bias slice
    h = jnp.dot(x, w1_ref[...], preferred_element_type=jnp.float32) + b1
    # Exact erf GELU (torch.nn.GELU() default), computed in f32.
    h = 0.5 * h * (1.0 + lax.erf(h * (1.0 / math.sqrt(2.0))))
    # Dropout(p=0.0) is the identity in both train and eval -> no-op.
    # TODO(synk): for dropout > 0, build a mask with pltpu.prng_seed / pltpu.prng_random_bits.
    return jnp.dot(h.astype(x.dtype), w2_ref[...], preferred_element_type=jnp.float32)


def _ffn_kernel_direct(x_ref, w1_ref, b1_ref, w2_ref, b2_ref, o_ref, *, th):
    """f32 output: accumulate straight into o_ref (no scratch -> saves tm*D*4 VMEM)."""
    j = pl.program_id(1)
    part = _gelu_partial(x_ref, w1_ref, b1_ref, w2_ref, j, th)

    @pl.when(j == 0)
    def _():
        o_ref[...] = part

    @pl.when(j > 0)
    def _():
        o_ref[...] += part

    @pl.when(j == pl.num_programs(1) - 1)
    def _():
        o_ref[...] += b2_ref[...]


def _ffn_kernel_scratch(x_ref, w1_ref, b1_ref, w2_ref, b2_ref, o_ref, acc_ref, *, th):
    """Narrow output dtype: accumulate in an f32 scratch, cast once at the end."""
    j = pl.program_id(1)
    part = _gelu_partial(x_ref, w1_ref, b1_ref, w2_ref, j, th)

    @pl.when(j == 0)
    def _():
        acc_ref[...] = part

    @pl.when(j > 0)
    def _():
        acc_ref[...] += part

    @pl.when(j == pl.num_programs(1) - 1)
    def _():
        o_ref[...] = (acc_ref[...] + b2_ref[...]).astype(o_ref.dtype)


# ----------------------------- host wrapper -----------------------------

def _vmem_capacity_bytes() -> int:
    try:
        return int(pltpu.get_tpu_info().vmem_capacity_bytes)
    except Exception:
        return 64 << 20  # conservative fallback (v7x per-TensorCore VMEM)


def _vmem_needed(tm_e, th_e, D, Hp, bx, bo, use_scratch):
    return (2 * tm_e * D * bx                       # x tile (double-buffered)
            + 2 * D * th_e * bx                     # W1 hidden tile
            + 2 * th_e * D * bx                     # W2 hidden tile
            + 2 * Hp * 4                            # b1 (full, f32)
            + 2 * D * 4                             # b2 (f32)
            + 2 * tm_e * D * bo                     # output tile
            + (tm_e * D * 4 if use_scratch else 0)  # f32 accumulator scratch
            + 2 * tm_e * th_e * 4                   # f32 GELU intermediate
            + tm_e * th_e * bx                      # downcast copy of the activation
            + tm_e * D * 4)                         # f32 partial of the second matmul


@functools.partial(jax.jit, static_argnames=("tm", "th", "compute_dtype"))
def feed_forward(x, w1, b1, w2, b2, *, tm=None, th=None, compute_dtype=None):
    """x: (B, N, D) -> (B, N, D).  GELU(x @ w1 + b1) @ w2 + b2 with dropout p = 0."""
    B, N, D = x.shape
    H = w1.shape[1]
    M = B * N
    out_dtype = x.dtype

    cdt = jnp.dtype(compute_dtype) if compute_dtype is not None else jnp.dtype(x.dtype)
    bx = cdt.itemsize
    bo = jnp.dtype(out_dtype).itemsize

    vmem_cap = _vmem_capacity_bytes()
    vmem_budget = vmem_cap - (8 << 20)              # compiler scratch headroom

    # Generation-aware defaults: large row tiles amortize per-row-tile weight re-streaming.
    if tm is None:
        tm = 1024 if vmem_budget >= (100 << 20) else 512
    if th is None:
        th = 1024 if vmem_budget >= (100 << 20) else 512

    # Sublane multiple of the narrowest participating dtype (8 f32 / 16 bf16 / 32 int8).
    sublane = 8 * max(1, 4 // min(bx, bo))

    # ---- hidden (reduction) tiling: always lane-aligned ----
    hp_min = _round_up(H, 128)
    th_eff = min(_round_up(th, 128), hp_min)
    Hp = _round_up(H, th_eff)

    # ---- row tiling, clamped to the problem ----
    tm_eff = min(_round_up(tm, sublane), _round_up(M, sublane))

    use_scratch = jnp.dtype(out_dtype) != jnp.dtype(jnp.float32)

    # Shrink tiles until the double-buffered working set fits physical VMEM (v7x: 64 MiB/TC).
    for _ in range(16):
        if _vmem_needed(tm_eff, th_eff, D, Hp, bx, bo, use_scratch) <= vmem_budget:
            break
        if th_eff > 256:
            th_eff = max(_round_up(th_eff // 2, 128), 128)
            Hp = _round_up(H, th_eff)
        elif tm_eff > 2 * sublane:
            tm_eff = max(_round_up(tm_eff // 2, sublane), sublane)
        else:
            break

    # Nudge the row-tile count even so the v7x megacore splits the "parallel" axis evenly.
    n_row = _cdiv(M, tm_eff)
    if n_row > 1 and n_row % 2 == 1:
        tm_try = _round_up(_cdiv(M, n_row + 1), sublane)
        if tm_try > 0 and _cdiv(M, tm_try) % 2 == 0:
            tm_eff = tm_try
    n_row = _cdiv(M, tm_eff)
    Mp = n_row * tm_eff
    n_hid = Hp // th_eff

    # ---- operand prep: matmul dtype for x/W1/W2, f32 biases ----
    x2d = x.reshape(M, D).astype(cdt)
    w1c = w1.astype(cdt)
    w2c = w2.astype(cdt)
    b1f = b1.reshape(1, H).astype(jnp.float32)
    b2f = b2.reshape(1, D).astype(jnp.float32)

    if Mp != M:
        x2d = jnp.pad(x2d, ((0, Mp - M), (0, 0)))
    if Hp != H:
        # Zero-padded hidden columns: GELU(0 + 0) = 0 and padded W2 rows are 0 -> no effect.
        w1c = jnp.pad(w1c, ((0, 0), (0, Hp - H)))
        b1f = jnp.pad(b1f, ((0, 0), (0, Hp - H)))
        w2c = jnp.pad(w2c, ((0, Hp - H), (0, 0)))

    vmem_needed = _vmem_needed(tm_eff, th_eff, D, Hp, bx, bo, use_scratch)
    vmem_limit = int(min(max(vmem_needed + (8 << 20), 32 << 20), vmem_budget))

    cost = pl.CostEstimate(
        flops=4 * M * D * H,                 # two (M, D, H) matmuls
        transcendentals=Mp * Hp,             # erf
        # W1 / W2 are re-streamed from HBM once per row tile.
        bytes_accessed=(Mp * D * bx
                        + n_row * (D * Hp * bx + Hp * D * bx)
                        + Hp * 4 + D * 4
                        + Mp * D * bo),
    )

    if use_scratch:
        kernel = functools.partial(_ffn_kernel_scratch, th=th_eff)
        scratch = [pltpu.VMEM((tm_eff, D), jnp.float32)]
    else:
        kernel = functools.partial(_ffn_kernel_direct, th=th_eff)
        scratch = []

    # TODO(synk): add pipeline_mode=pl.Buffered(3) on the W1/W2 specs if profiling shows
    # exposed weight DMA and the VMEM budget still closes (skip on v7x otherwise).
    out2d = pl.pallas_call(
        kernel,
        out_shape=jax.ShapeDtypeStruct((Mp, D), out_dtype),
        grid_spec=pltpu.PrefetchScalarGridSpec(
            num_scalar_prefetch=0,
            grid=(n_row, n_hid),
            in_specs=[
                pl.BlockSpec((tm_eff, D), lambda i, j: (i, 0)),   # x row tile
                pl.BlockSpec((D, th_eff), lambda i, j: (0, j)),   # W1 hidden tile
                pl.BlockSpec((1, Hp), lambda i, j: (0, 0)),       # b1 (resident, f32)
                pl.BlockSpec((th_eff, D), lambda i, j: (j, 0)),   # W2 hidden tile
                pl.BlockSpec((1, D), lambda i, j: (0, 0)),        # b2 (resident, f32)
            ],
            out_specs=pl.BlockSpec((tm_eff, D), lambda i, j: (i, 0)),
            scratch_shapes=scratch,
        ),
        compiler_params=pltpu.CompilerParams(
            dimension_semantics=("parallel", "arbitrary"),
            vmem_limit_bytes=vmem_limit,
        ),
        cost_estimate=cost,
    )(x2d, w1c, b1f, w2c, b2f)

    return out2d[:M].reshape(B, N, D)


# ----------------------------- reference / test -----------------------------

def _init_params(key, dim, hidden_dim, dtype=jnp.float32):
    """nn.Linear-style init; stored as (in, out) so the kernel computes x @ W + b."""
    k1, k2, k3, k4 = jax.random.split(key, 4)
    bound1 = 1.0 / math.sqrt(dim)
    bound2 = 1.0 / math.sqrt(hidden_dim)
    w1 = jax.random.uniform(k1, (dim, hidden_dim), dtype, -bound1, bound1)
    b1 = jax.random.uniform(k2, (hidden_dim,), dtype, -bound1, bound1)
    w2 = jax.random.uniform(k3, (hidden_dim, dim), dtype, -bound2, bound2)
    b2 = jax.random.uniform(k4, (dim,), dtype, -bound2, bound2)
    return w1, b1, w2, b2


def _reference(x, w1, b1, w2, b2):
    D = x.shape[-1]
    h = x.reshape(-1, D) @ w1 + b1.reshape(1, -1)
    h = 0.5 * h * (1.0 + lax.erf(h / math.sqrt(2.0)))
    return (h @ w2 + b2.reshape(1, -1)).reshape(x.shape)


if __name__ == "__main__":
    key = jax.random.PRNGKey(0)

    # ---- f32 configs: multi-tile reduction, default tiles, and the padding path ----
    f32_configs = [
        (2, 16, 128, 256, 16, 128),    # grid (2, 2): accumulate over 2 hidden tiles
        (2, 16, 128, 256, None, None), # generation-default tiles, clamped to the problem
        (2, 9, 128, 200, 16, 128),     # M=18 padded, H=200 padded to 256
    ]
    for (B, N, D, H, tm, th) in f32_configs:
        kx, kp, key = jax.random.split(key, 3)
        x = jax.random.normal(kx, (B, N, D), dtype=jnp.float32)
        w1, b1, w2, b2 = _init_params(kp, D, H)

        out = jax.block_until_ready(feed_forward(x, w1, b1, w2, b2, tm=tm, th=th))
        ref = _reference(x, w1, b1, w2, b2)
        assert jnp.allclose(out, ref, atol=1e-4, rtol=1e-4), (
            f"f32 mismatch vs reference for config {(B, N, D, H, tm, th)}")

    # ---- bf16 MXU path (bf16 inputs -> bf16 output, f32 scratch accumulator) ----
    kx, kp, key = jax.random.split(key, 3)
    B, N, D, H = 2, 16, 128, 256
    x = jax.random.normal(kx, (B, N, D), dtype=jnp.float32)
    w1, b1, w2, b2 = _init_params(kp, D, H)
    x_bf = x.astype(jnp.bfloat16)
    out_bf = jax.block_until_ready(feed_forward(x_bf, w1, b1, w2, b2, tm=16, th=128))
    ref_bf = _reference(x_bf.astype(jnp.float32),
                        w1.astype(jnp.bfloat16).astype(jnp.float32), b1,
                        w2.astype(jnp.bfloat16).astype(jnp.float32), b2)
    assert out_bf.dtype == jnp.bfloat16
    assert jnp.allclose(out_bf.astype(jnp.float32), ref_bf, atol=3e-2, rtol=3e-2), (
        "bf16-input mismatch vs reference")

    # ---- f32 inputs with a bf16 compute dtype (direct-into-output accumulation) ----
    out_mix = jax.block_until_ready(
        feed_forward(x, w1, b1, w2, b2, tm=16, th=128, compute_dtype=jnp.bfloat16))
    assert out_mix.dtype == jnp.float32
    assert jnp.allclose(out_mix, ref_bf, atol=3e-2, rtol=3e-2), (
        "bf16-compute mismatch vs reference")

    print("KERNEL_OK")
</pallas_src>

<mosaic_0001>
module attributes {stable_mosaic.version = 11 : i64} {
  func.func @_ffn_kernel_direct(%arg0: i32, %arg1: i32, %arg2: memref<16x128xf32, #tpu.memory_space<vmem>>, %arg3: memref<128x128xf32, #tpu.memory_space<vmem>>, %arg4: memref<1x256xf32, #tpu.memory_space<vmem>>, %arg5: memref<128x128xf32, #tpu.memory_space<vmem>>, %arg6: memref<1x128xf32, #tpu.memory_space<vmem>>, %arg7: memref<16x128xf32, #tpu.memory_space<vmem>>) attributes {dimension_semantics = [#tpu.dimension_semantics<parallel>, #tpu.dimension_semantics<arbitrary>], iteration_bounds = array<i64: 2, 2>, scalar_prefetch = 0 : i64, scratch_operands = 0 : i64, tpu.core_type = #tpu.core_type<tc>, window_params = [{transform_indices = @transform_0, window_bounds = array<i64: 16, 128>}, {transform_indices = @transform_1, window_bounds = array<i64: 128, 128>}, {pipeline_mode = #tpu.pipeline_mode<synchronous>, transform_indices = @transform_2, window_bounds = array<i64: 1, 256>}, {transform_indices = @transform_3, window_bounds = array<i64: 128, 128>}, {pipeline_mode = #tpu.pipeline_mode<synchronous>, transform_indices = @transform_4, window_bounds = array<i64: 1, 128>}, {transform_indices = @transform_5, window_bounds = array<i64: 16, 128>}]} {
    %c0 = arith.constant 0 : index
    %c0_0 = arith.constant 0 : index
    %0 = vector.load %arg2[%c0, %c0_0] : memref<16x128xf32, #tpu.memory_space<vmem>>, vector<16x128xf32>
    %c128_i32 = arith.constant 128 : i32
    %1 = arith.muli %arg1, %c128_i32 : i32
    %2 = tpu.assume_multiple %1, 128 : i32
    %c0_1 = arith.constant 0 : index
    %3 = arith.index_cast %2 : i32 to index
    %4 = vector.load %arg4[%c0_1, %3] : memref<1x256xf32, #tpu.memory_space<vmem>>, vector<1x128xf32>
    %c0_2 = arith.constant 0 : index
    %c0_3 = arith.constant 0 : index
    %5 = vector.load %arg3[%c0_2, %c0_3] : memref<128x128xf32, #tpu.memory_space<vmem>>, vector<128x128xf32>
    %cst = arith.constant dense<0.000000e+00> : vector<16x128xf32>
    %6 = tpu.matmul %0, %5, %cst {dimension_numbers = #tpu.dot_dimension_numbers<[1], [0], [0], [1], [0, 0, 1, 1], [], []>} : vector<16x128xf32>, vector<128x128xf32>, vector<16x128xf32> -> vector<16x128xf32>
    %7 = vector.broadcast %4 : vector<1x128xf32> to vector<16x128xf32>
    %8 = arith.addf %6, %7 : vector<16x128xf32>
    %cst_4 = arith.constant 5.000000e-01 : f32
    %9 = vector.broadcast %cst_4 : f32 to vector<16x128xf32>
    %10 = arith.mulf %9, %8 : vector<16x128xf32>
    %cst_5 = arith.constant 0.707106769 : f32
    %11 = vector.broadcast %cst_5 : f32 to vector<16x128xf32>
    %12 = arith.mulf %8, %11 : vector<16x128xf32>
    %13 = math.erf %12 : vector<16x128xf32>
    %cst_6 = arith.constant 1.000000e+00 : f32
    %14 = vector.broadcast %cst_6 : f32 to vector<16x128xf32>
    %15 = arith.addf %14, %13 : vector<16x128xf32>
    %16 = arith.mulf %10, %15 : vector<16x128xf32>
    %c0_7 = arith.constant 0 : index
    %c0_8 = arith.constant 0 : index
    %17 = vector.load %arg5[%c0_7, %c0_8] : memref<128x128xf32, #tpu.memory_space<vmem>>, vector<128x128xf32>
    %cst_9 = arith.constant dense<0.000000e+00> : vector<16x128xf32>
    %18 = tpu.matmul %16, %17, %cst_9 {dimension_numbers = #tpu.dot_dimension_numbers<[1], [0], [0], [1], [0, 0, 1, 1], [], []>} : vector<16x128xf32>, vector<128x128xf32>, vector<16x128xf32> -> vector<16x128xf32>
    %c0_i32 = arith.constant 0 : i32
    %19 = arith.cmpi eq, %arg1, %c0_i32 : i32
    %20 = arith.extui %19 : i1 to i32
    %c0_i32_10 = arith.constant 0 : i32
    %21 = arith.cmpi ne, %20, %c0_i32_10 : i32
    scf.if %21 {
      %c0_14 = arith.constant 0 : index
      %c0_15 = arith.constant 0 : index
      %28 = vector.load %arg7[%c0_14, %c0_15] : memref<16x128xf32, #tpu.memory_space<vmem>>, vector<16x128xf32>
      tpu.vector_store %arg7[%c0_14, %c0_15], %18 {strides = array<i32>} : memref<16x128xf32, #tpu.memory_space<vmem>>, vector<16x128xf32>,
    } else {
    }
    %c0_i32_11 = arith.constant 0 : i32
    %22 = arith.cmpi sgt, %arg1, %c0_i32_11 : i32
    %23 = arith.extui %22 : i1 to i32
    %c0_i32_12 = arith.constant 0 : i32
    %24 = arith.cmpi ne, %23, %c0_i32_12 : i32
    scf.if %24 {
      %c0_14 = arith.constant 0 : index
      %c0_15 = arith.constant 0 : index
      %28 = vector.load %arg7[%c0_14, %c0_15] : memref<16x128xf32, #tpu.memory_space<vmem>>, vector<16x128xf32>
      %29 = arith.addf %28, %18 : vector<16x128xf32>
      %c0_16 = arith.constant 0 : index
      %c0_17 = arith.constant 0 : index
      %30 = vector.load %arg7[%c0_16, %c0_17] : memref<16x128xf32, #tpu.memory_space<vmem>>, vector<16x128xf32>
      tpu.vector_store %arg7[%c0_16, %c0_17], %29 {strides = array<i32>} : memref<16x128xf32, #tpu.memory_space<vmem>>, vector<16x128xf32>,
    } else {
    }
    %c1_i32 = arith.constant 1 : i32
    %25 = arith.cmpi eq, %arg1, %c1_i32 : i32
    %26 = arith.extui %25 : i1 to i32
    %c0_i32_13 = arith.constant 0 : i32
    %27 = arith.cmpi ne, %26, %c0_i32_13 : i32
    scf.if %27 {
      %c0_14 = arith.constant 0 : index
      %c0_15 = arith.constant 0 : index
      %28 = vector.load %arg7[%c0_14, %c0_15] : memref<16x128xf32, #tpu.memory_space<vmem>>, vector<16x128xf32>
      %c0_16 = arith.constant 0 : index
      %c0_17 = arith.constant 0 : index
      %29 = vector.load %arg6[%c0_16, %c0_17] : memref<1x128xf32, #tpu.memory_space<vmem>>, vector<1x128xf32>
      %30 = vector.broadcast %29 : vector<1x128xf32> to vector<16x128xf32>
      %31 = arith.addf %28, %30 : vector<16x128xf32>
      %c0_18 = arith.constant 0 : index
      %c0_19 = arith.constant 0 : index
      %32 = vector.load %arg7[%c0_18, %c0_19] : memref<16x128xf32, #tpu.memory_space<vmem>>, vector<16x128xf32>
      tpu.vector_store %arg7[%c0_18, %c0_19], %31 {strides = array<i32>} : memref<16x128xf32, #tpu.memory_space<vmem>>, vector<16x128xf32>,
    } else {
    }
    return
  }
  func.func @transform_0(%arg0: i32, %arg1: i32) -> (i32, i32) {
    %c0_i32 = arith.constant 0 : i32
    %c0_i32_0 = arith.constant 0 : i32
    return %arg0, %c0_i32 : i32, i32
  }
  func.func @transform_1(%arg0: i32, %arg1: i32) -> (i32, i32) {
    %c0_i32 = arith.constant 0 : i32
    %c0_i32_0 = arith.constant 0 : i32
    return %c0_i32, %arg1 : i32, i32
  }
  func.func @transform_2(%arg0: i32, %arg1: i32) -> (i32, i32) {
    %c0_i32 = arith.constant 0 : i32
    %c0_i32_0 = arith.constant 0 : i32
    %c0_i32_1 = arith.constant 0 : i32
    return %c0_i32, %c0_i32_0 : i32, i32
  }
  func.func @transform_3(%arg0: i32, %arg1: i32) -> (i32, i32) {
    %c0_i32 = arith.constant 0 : i32
    %c0_i32_0 = arith.constant 0 : i32
    return %arg1, %c0_i32 : i32, i32
  }
  func.func @transform_4(%arg0: i32, %arg1: i32) -> (i32, i32) {
    %c0_i32 = arith.constant 0 : i32
    %c0_i32_0 = arith.constant 0 : i32
    %c0_i32_1 = arith.constant 0 : i32
    return %c0_i32, %c0_i32_0 : i32, i32
  }
  func.func @transform_5(%arg0: i32, %arg1: i32) -> (i32, i32) {
    %c0_i32 = arith.constant 0 : i32
    %c0_i32_0 = arith.constant 0 : i32
    return %arg0, %c0_i32 : i32, i32
  }
}

</mosaic_0001>

<llo_original>
// kernel: feed_forward.1
$region0: #{feed_forward.1}
  #allocation0 [shape = 'u32[]', space=smem, size = 0x4, offset = 0x4, fixed_abs, tag = 'smem constant byte address 0x4 - core index']
  #allocation1 [shape = 'u32[144,128]{1,0:T(1,128)}', space=vmem, size = 0x12000, scoped, tag = 'internal scratch']
  %s0 = inlined_call_operand.hbm [shape: f32[32,128], index: 0, kind: input, shape index: {}]
  %s1 = inlined_call_operand.hbm [shape: f32[128,256], index: 1, kind: input, shape index: {}]
  %s2 = inlined_call_operand.vmem [shape: f32[1,256], index: 2, kind: input, shape index: {}]
  %s3 = inlined_call_operand.hbm [shape: f32[256,128], index: 3, kind: input, shape index: {}]
  %s4 = inlined_call_operand.vmem [shape: f32[1,128], index: 4, kind: input, shape index: {}]
  %s5 = inlined_call_operand.hbm [shape: f32[32,128], index: 5, kind: output, shape index: {}]
  %s6 = sld [smem:[#allocation0]]
  $region77: #{feed_forward.1} parent=0
    _
  %s8 = ssub.s32 1, %s6
  %s9 = scalar_select 0, %s8, %s6
  $region1: #{feed_forward.1} parent=0
    #allocation2 [shape = 'u8[16384]{0}', space=vmem, size = 0x4000, scoped, tag = 'input window, operand 0']
    #allocation3 [shape = 's32[2]{0}', space=sflag, size = 0x8, scoped, tag = 'scoped memory for feed_forward.1']
    #allocation4 [shape = 's32[2]{0}', space=sflag, size = 0x8, scoped, tag = 'scoped memory for feed_forward.1']
    #allocation5 [shape = 'u8[131072]{0}', space=vmem, size = 0x20000, scoped, tag = 'input window, operand 1']
    #allocation6 [shape = 's32[2]{0}', space=sflag, size = 0x8, scoped, tag = 'scoped memory for feed_forward.1']
    #allocation7 [shape = 'u8[131072]{0}', space=vmem, size = 0x20000, scoped, tag = 'input window, operand 3']
    #allocation8 [shape = 'u8[16384]{0}', space=vmem, size = 0x4000, scoped, tag = 'output window, operand 0']
    %10 = vsyncpa [#allocation3], 0
    %s11 = scalar_lea.sflag [#allocation3], 1
    %12 = vsyncpa %s11, 0
    %13 = vsyncpa [#allocation6], 0
    %s14 = scalar_lea.sflag [#allocation6], 1
    %15 = vsyncpa %s14, 0
    %16 = vsyncpa [#allocation4], 0
    %s17 = scalar_lea.sflag [#allocation4], 1
    %18 = vsyncpa %s17, 0
    loop: start=0, step=1, limit=6
    $region2: #{feed_forward.1} parent=1 // loop_pre_header
      _
    $region3: #{feed_forward.1} parent=1 // loop_header
      %s20 = sphi 0, %s24
      %p21 = scmp.ge.s32.totalorder %s20, 6
      %s27 = sphi 0, %s39
      %s28 = sphi 0, %s35
      %s29 = sphi 0, %s27
      %s30 = sphi 0, %s28
      %s31 = sphi 0, %s29
      %s32 = sphi 0, %s30
      %s42 = sphi 0, %s44
      %s45 = sphi 0, %s42
      %s46 = sphi 0, %s45
      %s62 = sphi 0, %s46
      %s68 = sphi 0, %s70
      %s71 = sphi 0, %s68
      %s72 = sphi 0, %s71
      %s88 = sphi 0, %s72
      %s92 = sphi 0, %s92
      %s94 = sphi 0, %s92
      %s95 = sphi 0, %s94
      %s109 = sphi 0, %s95
      %s115 = sphi 0, %s117
      %s118 = sphi 0, %s115
      %s119 = sphi 0, %s118
      %s135 = sphi 0, %s119
      %s139 = sphi 0, %s139
      %s141 = sphi 0, %s139
      %s142 = sphi 0, %s141
      %s156 = sphi 0, %s142
      %s162 = sphi 0, %s164
      %s165 = sphi 0, %s162
      %s166 = sphi 0, %s165
      %s182 = sphi 0, %s166
    $region4: #{feed_forward.1} parent=1 // loop_header_branch
      %23 = sbr.rel (%p21) target = $region8
    $region5: #{feed_forward.1} parent=1 // loop_body
      %s25 = ssub.s32 %s20, 1
      %s26 = ssub.s32 %s20, 2
      %s33 = sadd.s32 1, %s28
      %p34 = scmp.ge.s32.totalorder %s33, 2
      %s35 = scalar_select %p34, 0, %s33
      %s36 = sadd.s32 1, %s27
      %s37 = scalar_select %p34, %s36, %s27
      %p38 = scmp.ge.s32.totalorder %s37, 2
      %s39 = scalar_select %p38, 0, %s37
      %s40 = ssub.s32 %s27, %s39
      %p41 = scmp.eq.s32.totalorder %s40, 0
      %s43 = sadd.s32 %s42, 1
      %s44 = scalar_select %p41, %s42, %s43
      %p47 = pneg %p41
      %p48 = scmp.eq.s32.totalorder %s20, 3
      %p49 = por %p47, %p48
      %p50 = scmp.ne.s32.totalorder %s42, %s45
      %p51 = scmp.eq.s32.totalorder %s20, 0
      %p52 = por %p50, %p51
      %p53 = scmp.ne.s32.totalorder %s42, %s45
      %p54 = scmp.eq.s32.totalorder %s25, 3
      %p55 = por %p53, %p54
      %p56 = scmp.ne.s32.totalorder %s45, %s46
      %p57 = scmp.eq.s32.totalorder %s25, 0
      %p58 = por %p56, %p57
      %p59 = scmp.ne.s32.totalorder %s45, %s46
      %p60 = scmp.eq.s32.totalorder %s26, 3
      %p61 = por %p59, %p60
      %p63 = scmp.ne.s32.totalorder %s46, %s62
      %p64 = scmp.eq.s32.totalorder %s26, 0
      %p65 = por %p63, %p64
      %s66 = ssub.s32 %s28, %s35
      %p67 = scmp.eq.s32.totalorder %s66, 0
      %s69 = sadd.s32 %s68, 1
      %s70 = scalar_select %p67, %s68, %s69
      %p73 = pneg %p67
      %p74 = scmp.eq.s32.totalorder %s20, 3
      %p75 = por %p73, %p74
      %p76 = scmp.ne.s32.totalorder %s68, %s71
      %p77 = scmp.eq.s32.totalorder %s20, 0
      %p78 = por %p76, %p77
      %p79 = scmp.ne.s32.totalorder %s68, %s71
      %p80 = scmp.eq.s32.totalorder %s25, 3
      %p81 = por %p79, %p80
      %p82 = scmp.ne.s32.totalorder %s71, %s72
      %p83 = scmp.eq.s32.totalorder %s25, 0
      %p84 = por %p82, %p83
      %p85 = scmp.ne.s32.totalorder %s71, %s72
      %p86 = scmp.eq.s32.totalorder %s26, 3
      %p87 = por %p85, %p86
      %p89 = scmp.ne.s32.totalorder %s72, %s88
      %p90 = scmp.eq.s32.totalorder %s26, 0
      %p91 = por %p89, %p90
      %s93 = sadd.s32 %s92, 1
      %p96 = scmp.eq.s32.totalorder %s20, 3
      %p97 = scmp.ne.s32.totalorder %s92, %s94
      %p98 = scmp.eq.s32.totalorder %s20, 0
      %p99 = por %p97, %p98
      %p100 = scmp.ne.s32.totalorder %s92, %s94
      %p101 = scmp.eq.s32.totalorder %s25, 3
      %p102 = por %p100, %p101
      %p103 = scmp.ne.s32.totalorder %s94, %s95
      %p104 = scmp.eq.s32.totalorder %s25, 0
      %p105 = por %p103, %p104
      %p106 = scmp.ne.s32.totalorder %s94, %s95
      %p107 = scmp.eq.s32.totalorder %s26, 3
      %p108 = por %p106, %p107
      %p110 = scmp.ne.s32.totalorder %s95, %s109
      %p111 = scmp.eq.s32.totalorder %s26, 0
      %p112 = por %p110, %p111
      %s113 = ssub.s32 %s28, %s35
      %p114 = scmp.eq.s32.totalorder %s113, 0
      %s116 = sadd.s32 %s115, 1
      %s117 = scalar_select %p114, %s115, %s116
      %p120 = pneg %p114
      %p121 = scmp.eq.s32.totalorder %s20, 3
      %p122 = por %p120, %p121
      %p123 = scmp.ne.s32.totalorder %s115, %s118
      %p124 = scmp.eq.s32.totalorder %s20, 0
      %p125 = por %p123, %p124
      %p126 = scmp.ne.s32.totalorder %s115, %s118
      %p127 = scmp.eq.s32.totalorder %s25, 3
      %p128 = por %p126, %p127
      %p129 = scmp.ne.s32.totalorder %s118, %s119
      %p130 = scmp.eq.s32.totalorder %s25, 0
      %p131 = por %p129, %p130
      %p132 = scmp.ne.s32.totalorder %s118, %s119
      %p133 = scmp.eq.s32.totalorder %s26, 3
      %p134 = por %p132, %p133
      %p136 = scmp.ne.s32.totalorder %s119, %s135
      %p137 = scmp.eq.s32.totalorder %s26, 0
      %p138 = por %p136, %p137
      %s140 = sadd.s32 %s139, 1
      %p143 = scmp.eq.s32.totalorder %s20, 3
      %p144 = scmp.ne.s32.totalorder %s139, %s141
      %p145 = scmp.eq.s32.totalorder %s20, 0
      %p146 = por %p144, %p145
      %p147 = scmp.ne.s32.totalorder %s139, %s141
      %p148 = scmp.eq.s32.totalorder %s25, 3
      %p149 = por %p147, %p148
      %p150 = scmp.ne.s32.totalorder %s141, %s142
      %p151 = scmp.eq.s32.totalorder %s25, 0
      %p152 = por %p150, %p151
      %p153 = scmp.ne.s32.totalorder %s141, %s142
      %p154 = scmp.eq.s32.totalorder %s26, 3
      %p155 = por %p153, %p154
      %p157 = scmp.ne.s32.totalorder %s142, %s156
      %p158 = scmp.eq.s32.totalorder %s26, 0
      %p159 = por %p157, %p158
      %s160 = ssub.s32 %s27, %s39
      %p161 = scmp.eq.s32.totalorder %s160, 0
      %s163 = sadd.s32 %s162, 1
      %s164 = scalar_select %p161, %s162, %s163
      %p167 = pneg %p161
      %p168 = scmp.eq.s32.totalorder %s20, 3
      %p169 = por %p167, %p168
      %p170 = scmp.ne.s32.totalorder %s162, %s165
      %p171 = scmp.eq.s32.totalorder %s20, 0
      %p172 = por %p170, %p171
      %p173 = scmp.ne.s32.totalorder %s162, %s165
      %p174 = scmp.eq.s32.totalorder %s25, 3
      %p175 = por %p173, %p174
      %p176 = scmp.ne.s32.totalorder %s165, %s166
      %p177 = scmp.eq.s32.totalorder %s25, 0
      %p178 = por %p176, %p177
      %p179 = scmp.ne.s32.totalorder %s165, %s166
      %p180 = scmp.eq.s32.totalorder %s26, 3
      %p181 = por %p179, %p180
      %p183 = scmp.ne.s32.totalorder %s166, %s182
      %p184 = scmp.eq.s32.totalorder %s26, 0
      %p185 = por %p183, %p184
      %p186 = scmp.le.s32.totalorder 1, %s20
      %p187 = scmp.lt.s32.totalorder %s20, 5
      %p188 = pnand %p186, %p187
      %p189 = pneg %p188
      // Predicated region
      $region9: #{feed_forward.1} parent=5 // pred_check
        _
      $region10: #{feed_forward.1} parent=5 // pred_check_branch
        %191 = sbr.rel (%p188) target = $region12
      $region11: #{feed_forward.1} parent=5 // pred_region
        %s192 = ssub.s32 %s20, 1
        // Predicated region
        $region13: #{feed_forward.1} parent=11 // pred_check
          %p193 = pneg %p105
        $region14: #{feed_forward.1} parent=11 // pred_check_branch
          %195 = sbr.rel (%p193) target = $region16
        $region15: #{feed_forward.1} parent=11 // pred_region
          _
        $region16: #{feed_forward.1} parent=11 // pred_fallthru
          _
        // Predicated region
        $region17: #{feed_forward.1} parent=11 // pred_check
          %p196 = pneg %p152
        $region18: #{feed_forward.1} parent=11 // pred_check_branch
          %198 = sbr.rel (%p196) target = $region20
        $region19: #{feed_forward.1} parent=11 // pred_region
          _
        $region20: #{feed_forward.1} parent=11 // pred_fallthru
          _
      $region12: #{feed_forward.1} parent=5 // pred_fallthru
        _
      %p199 = scmp.lt.s32.totalorder %s20, 4
      // Predicated region
      $region21: #{feed_forward.1} parent=5 // pred_check
        %p200 = pneg %p199
      $region22: #{feed_forward.1} parent=5 // pred_check_branch
        %202 = sbr.rel (%p200) target = $region24
      $region23: #{feed_forward.1} parent=5 // pred_region
        // Predicated region
        $region25: #{feed_forward.1} parent=23 // pred_check
          %p203 = pneg %p52
        $region26: #{feed_forward.1} parent=23 // pred_check_branch
          %205 = sbr.rel (%p203) target = $region28
        $region27: #{feed_forward.1} parent=23 // pred_region
          %s206 = sand.u32 %s42, 1
          %s207 = scalar_lea.sflag [#allocation3], %s206
          %s208 = sand.u32 %s42, 1
          %s209 = smul.addr %s208, 16
          %s210 = scalar_lea.vmem [#allocation2], %s209
          %s211 = smul.u32 2, %s27
          %s213 = ssub.s32 256, 256
          %214 = vsyncadd %s207, %s213
          %s215 = smul.addr %s211, 128
          %s216 = scalar_lea.hbm %s0, %s215
          %s217 = sshll.u32 %s210, 4
          %s218 = int_to_ptr.vmem [resolvable:$true] %s217
          %223 = dma.hbm_to_vmem [thread:$0]  %s216, 256, %s218, %s207, 128, 128, 8
        $region28: #{feed_forward.1} parent=23 // pred_fallthru
          _
        // Predicated region
        $region29: #{feed_forward.1} parent=23 // pred_check
          %p224 = pneg %p78
        $region30: #{feed_forward.1} parent=23 // pred_check_branch
          %226 = sbr.rel (%p224) target = $region32
        $region31: #{feed_forward.1} parent=23 // pred_region
          %s227 = sand.u32 %s20, 1
          %s228 = scalar_lea.sflag [#allocation6], %s227
          %s229 = sand.u32 %s68, 1
          %s230 = smul.addr %s229, 128
          %s231 = scalar_lea.vmem [#allocation5], %s230
          %s233 = ssub.s32 2048, 2048
          %234 = vsyncadd %s228, %s233
          %s235 = smul.addr %s28, 128
          %s236 = scalar_lea.hbm %s1, %s235
          %s237 = sshll.u32 %s231, 4
          %s238 = int_to_ptr.vmem [resolvable:$true] %s237
          %243 = dma.hbm_to_vmem [thread:$0]  %s236, 2048, %s238, %s228, 256, 128, 8
        $region32: #{feed_forward.1} parent=23 // pred_fallthru
          _
        // Predicated region
        $region33: #{feed_forward.1} parent=23 // pred_check
          %p244 = pneg %p125
        $region34: #{feed_forward.1} parent=23 // pred_check_branch
          %246 = sbr.rel (%p244) target = $region36
        $region35: #{feed_forward.1} parent=23 // pred_region
          %s247 = sand.u32 %s20, 1
          %s248 = scalar_lea.sflag [#allocation6], %s247
          %s249 = sand.u32 %s115, 1
          %s250 = smul.addr %s249, 128
          %s251 = scalar_lea.vmem [#allocation7], %s250
          %s252 = smul.u32 16, %s28
          %s254 = ssub.s32 2048, 2048
          %255 = vsyncadd %s248, %s254
          %s256 = smul.addr %s252, 128
          %s257 = scalar_lea.hbm %s3, %s256
          %s258 = sshll.u32 %s251, 4
          %s259 = int_to_ptr.vmem [resolvable:$true] %s258
          %264 = dma.hbm_to_vmem [thread:$0]  %s257, 2048, %s259, %s248, 128, 128, 8
        $region36: #{feed_forward.1} parent=23 // pred_fallthru
          _
      $region24: #{feed_forward.1} parent=5 // pred_fallthru
        _
      %p265 = scmp.le.s32.totalorder 1, %s20
      %p266 = scmp.lt.s32.totalorder %s20, 5
      %p267 = pnand %p265, %p266
      %p268 = pneg %p267
      // Predicated region
      $region37: #{feed_forward.1} parent=5 // pred_check
        _
      $region38: #{feed_forward.1} parent=5 // pred_check_branch
        %270 = sbr.rel (%p267) target = $region40
      $region39: #{feed_forward.1} parent=5 // pred_region
        %s271 = ssub.s32 %s20, 1
        %s272 = sand.u32 %s45, 1
        %s273 = scalar_lea.sflag [#allocation3], %s272
        %s274 = sand.u32 %s45, 1
        %s275 = smul.addr %s274, 16
        %s276 = scalar_lea.vmem [#allocation2], %s275
        // Predicated region
        $region41: #{feed_forward.1} parent=39 // pred_check
          %p277 = pneg %p58
        $region42: #{feed_forward.1} parent=39 // pred_check_branch
          %279 = sbr.rel (%p277) target = $region44
        $region43: #{feed_forward.1} parent=39 // pred_region
          %280 = dma.done %s273, 256
        $region44: #{feed_forward.1} parent=39 // pred_fallthru
          _
        %s281 = sand.u32 %s25, 1
        %s282 = scalar_lea.sflag [#allocation6], %s281
        %s283 = sand.u32 %s71, 1
        %s284 = smul.addr %s283, 128
        %s285 = scalar_lea.vmem [#allocation5], %s284
        // Predicated region
        $region45: #{feed_forward.1} parent=39 // pred_check
          %p286 = pneg %p84
        $region46: #{feed_forward.1} parent=39 // pred_check_branch
          %288 = sbr.rel (%p286) target = $region48
        $region47: #{feed_forward.1} parent=39 // pred_region
          %289 = dma.done %s282, 2048
        $region48: #{feed_forward.1} parent=39 // pred_fallthru
          _
        %s290 = sand.u32 %s25, 1
        %s291 = scalar_lea.sflag [#allocation6], %s290
        %s292 = sand.u32 %s118, 1
        %s293 = smul.addr %s292, 128
        %s294 = scalar_lea.vmem [#allocation7], %s293
        // Predicated region
        $region49: #{feed_forward.1} parent=39 // pred_check
          %p295 = pneg %p131
        $region50: #{feed_forward.1} parent=39 // pred_check_branch
          %297 = sbr.rel (%p295) target = $region52
        $region51: #{feed_forward.1} parent=39 // pred_region
          %298 = dma.done %s291, 2048
        $region52: #{feed_forward.1} parent=39 // pred_fallthru
          _
        %s299 = sand.u32 %s45, 1
        %s300 = scalar_lea.sflag [#allocation3], %s299
        %s301 = sand.u32 %s45, 1
        %s302 = smul.addr %s301, 16
        %s303 = scalar_lea.vmem [#allocation2], %s302
        %p304 = pneg %p58
        %p305 = pneg %p55
        %s306 = sand.u32 %s25, 1
        %s307 = scalar_lea.sflag [#allocation6], %s306
        %s308 = sand.u32 %s71, 1
        %s309 = smul.addr %s308, 128
        %s310 = scalar_lea.vmem [#allocation5], %s309
        %p311 = pneg %p84
        %p312 = pneg %p81
        %p313 = pneg %p105
        %p314 = pneg %p102
        %s315 = sand.u32 %s25, 1
        %s316 = scalar_lea.sflag [#allocation6], %s315
        %s317 = sand.u32 %s118, 1
        %s318 = smul.addr %s317, 128
        %s319 = scalar_lea.vmem [#allocation7], %s318
        %p320 = pneg %p131
        %p321 = pneg %p128
        %p322 = pneg %p152
        %p323 = pneg %p149
        %p324 = pneg %p178
        %p325 = pneg %p175
        %s326 = sand.u32 %s165, 1
        %s327 = scalar_lea.sflag [#allocation4], %s326
        %s328 = sand.u32 %s165, 1
        %s329 = smul.addr %s328, 16
        %s330 = scalar_lea.vmem [#allocation8], %s329
        %s331 = smul.u32 2, %s29
        %s332 = smul.u32 16, %s30
        %s333 = smul.u32 2, %s29
        %v334 = vld [vmem:[%s276] sm:$0xff]
        %v335 = vld [vmem:[%s276 + $0x8] sm:$0xff]
        %s336 = smul.u32 %s30, 128
        %s337 = sshra.s32 %s336, 7
        %s338 = sand.u32 %s336, 127
        %s339 = scalar_lea.vmem %s2, %s337
        %v340 = vld [vmem:[%s339] sm:$0x1]
        %v341 = vld [vmem:[%s285] sm:$0xff]
        %v342 = vld [vmem:[%s285 + $0x8] sm:$0xff]
        %v343 = vld [vmem:[%s285 + $0x10] sm:$0xff]
        %v344 = vld [vmem:[%s285 + $0x18] sm:$0xff]
        %v345 = vld [vmem:[%s285 + $0x20] sm:$0xff]
        %v346 = vld [vmem:[%s285 + $0x28] sm:$0xff]
        %v347 = vld [vmem:[%s285 + $0x30] sm:$0xff]
        %v348 = vld [vmem:[%s285 + $0x38] sm:$0xff]
        %v349 = vld [vmem:[%s285 + $0x40] sm:$0xff]
        %v350 = vld [vmem:[%s285 + $0x48] sm:$0xff]
        %v351 = vld [vmem:[%s285 + $0x50] sm:$0xff]
        %v352 = vld [vmem:[%s285 + $0x58] sm:$0xff]
        %v353 = vld [vmem:[%s285 + $0x60] sm:$0xff]
        %v354 = vld [vmem:[%s285 + $0x68] sm:$0xff]
        %v355 = vld [vmem:[%s285 + $0x70] sm:$0xff]
        %v356 = vld [vmem:[%s285 + $0x78] sm:$0xff]
        %v358 = vlaneseq
        %v359 = vshrl.u32 %v358, 7
        %v360 = vsub.s32 0, %v359
        %v361 = vrot.slane %v340, %v360
        %363 = vmatprep.subr.mxu0 0.0
        %364 = vmatpush1.msra.mxu0 %v341
        %365 = vmatprep.subr.mxu0 0.0
        %366 = vmatpush1.msra.mxu0 %v342
        %367 = vmatprep.subr.mxu0 0.0
        %368 = vmatpush1.msra.mxu0 %v343
        %369 = vmatprep.subr.mxu0 0.0
        %370 = vmatpush1.msra.mxu0 %v344
        %371 = vmatprep.subr.mxu0 0.0
        %372 = vmatpush1.msra.mxu0 %v345
        %373 = vmatprep.subr.mxu0 0.0
        %374 = vmatpush1.msra.mxu0 %v346
        %375 = vmatprep.subr.mxu0 0.0
        %376 = vmatpush1.msra.mxu0 %v347
        %377 = vmatprep.subr.mxu0 0.0
        %378 = vmatpush1.msra.mxu0 %v348
        %379 = vmatprep.subr.mxu0 0.0
        %380 = vmatpush1.msra.mxu0 %v349
        %381 = vmatprep.subr.mxu0 0.0
        %382 = vmatpush1.msra.mxu0 %v350
        %383 = vmatprep.subr.mxu0 0.0
        %384 = vmatpush1.msra.mxu0 %v351
        %385 = vmatprep.subr.mxu0 0.0
        %386 = vmatpush1.msra.mxu0 %v352
        %387 = vmatprep.subr.mxu0 0.0
        %388 = vmatpush1.msra.mxu0 %v353
        %389 = vmatprep.subr.mxu0 0.0
        %390 = vmatpush1.msra.mxu0 %v354
        %391 = vmatprep.subr.mxu0 0.0
        %392 = vmatpush1.msra.mxu0 %v355
        %393 = vmatprep.subr.mxu0 0.0
        %394 = vmatpush1.msra.mxu0 %v356
        %395 = vmatprep.subr.mxu0 0.0
        %396 = vmatpush1.msra.mxu0 0.0
        %397 = vmatprep.subr.mxu0 0.0
        %398 = vmatpush1.msra.mxu0 0.0
        %399 = vmatprep.subr.mxu0 0.0
        %400 = vmatpush1.msra.mxu0 0.0
        %401 = vmatprep.subr.mxu0 0.0
        %402 = vmatpush1.msra.mxu0 0.0
        %403 = vmatprep.subr.mxu0 0.0
        %404 = vmatpush1.msra.mxu0 0.0
        %405 = vmatprep.subr.mxu0 0.0
        %406 = vmatpush1.msra.mxu0 0.0
        %407 = vmatprep.subr.mxu0 0.0
        %408 = vmatpush1.msra.mxu0 0.0
        %409 = vmatprep.subr.mxu0 0.0
        %410 = vmatpush1.msra.mxu0 0.0
        %411 = vmatprep.subr.mxu0 0.0
        %412 = vmatpush1.msra.mxu0 0.0
        %413 = vmatprep.subr.mxu0 0.0
        %414 = vmatpush1.msra.mxu0 0.0
        %415 = vmatprep.subr.mxu0 0.0
        %416 = vmatpush1.msra.mxu0 0.0
        %417 = vmatprep.subr.mxu0 0.0
        %418 = vmatpush1.msra.mxu0 0.0
        %419 = vmatprep.subr.mxu0 0.0
        %420 = vmatpush1.msra.mxu0 0.0
        %421 = vmatprep.subr.mxu0 0.0
        %422 = vmatpush1.msra.mxu0 0.0
        %423 = vmatprep.subr.mxu0 0.0
        %424 = vmatpush1.msra.mxu0 0.0
        %425 = vmatprep.subr.mxu0 0.0
        %426 = vmatpush1.msra.mxu0 0.0
        %427 = vmatprep.mubr.f32.mxu0 0.0
        %428 = vmatmul.mubr.f32.gmra.mrb[0].mxu0 %v334
        %v429 = vpop.f32.mrb[0].mxu0
        %v430 = vadd.f32 %v361, %v429
        %v431 = vpop.f32.mrb[0].mxu0
        %432 = vmatprep.mubr.f32.mxu0 0.0
        %433 = vmatmul.mubr.f32.gmra.mrb[0].mxu0 %v335
        %v434 = vpop.f32.mrb[0].mxu0
        %v435 = vadd.f32 %v361, %v434
        %v436 = vpop.f32.mrb[0].mxu0
        %437 = vdwg.mxu0
        %v438 = vmul.f32 %v430, 0.5
        %v439 = vmul.f32 %v435, 0.5
        %v440 = vmul.f32 %v430, 0.70710677
        %v441 = vmul.f32 %v435, 0.70710677
        %v442 = verf.f32.pop %v440
        %v443 = verf.f32.pop %v441
        %v444 = vadd.f32 %v442, 1.0
        %v445 = vadd.f32 %v443, 1.0
        %v446 = vmul.f32 %v438, %v444
        %v447 = vmul.f32 %v439, %v445
        %v448 = vld [vmem:[%s294] sm:$0xff]
        %v449 = vld [vmem:[%s294 + $0x8] sm:$0xff]
        %v450 = vld [vmem:[%s294 + $0x10] sm:$0xff]
        %v451 = vld [vmem:[%s294 + $0x18] sm:$0xff]
        %v452 = vld [vmem:[%s294 + $0x20] sm:$0xff]
        %v453 = vld [vmem:[%s294 + $0x28] sm:$0xff]
        %v454 = vld [vmem:[%s294 + $0x30] sm:$0xff]
        %v455 = vld [vmem:[%s294 + $0x38] sm:$0xff]
        %v456 = vld [vmem:[%s294 + $0x40] sm:$0xff]
        %v457 = vld [vmem:[%s294 + $0x48] sm:$0xff]
        %v458 = vld [vmem:[%s294 + $0x50] sm:$0xff]
        %v459 = vld [vmem:[%s294 + $0x58] sm:$0xff]
        %v460 = vld [vmem:[%s294 + $0x60] sm:$0xff]
        %v461 = vld [vmem:[%s294 + $0x68] sm:$0xff]
        %v462 = vld [vmem:[%s294 + $0x70] sm:$0xff]
        %v463 = vld [vmem:[%s294 + $0x78] sm:$0xff]
        %464 = vmatprep.subr.mxu0 0.0
        %465 = vmatpush1.msra.mxu0 %v448
        %466 = vmatprep.subr.mxu0 0.0
        %467 = vmatpush1.msra.mxu0 %v449
        %468 = vmatprep.subr.mxu0 0.0
        %469 = vmatpush1.msra.mxu0 %v450
        %470 = vmatprep.subr.mxu0 0.0
        %471 = vmatpush1.msra.mxu0 %v451
        %472 = vmatprep.subr.mxu0 0.0
        %473 = vmatpush1.msra.mxu0 %v452
        %474 = vmatprep.subr.mxu0 0.0
        %475 = vmatpush1.msra.mxu0 %v453
        %476 = vmatprep.subr.mxu0 0.0
        %477 = vmatpush1.msra.mxu0 %v454
        %478 = vmatprep.subr.mxu0 0.0
        %479 = vmatpush1.msra.mxu0 %v455
        %480 = vmatprep.subr.mxu0 0.0
        %481 = vmatpush1.msra.mxu0 %v456
        %482 = vmatprep.subr.mxu0 0.0
        %483 = vmatpush1.msra.mxu0 %v457
        %484 = vmatprep.subr.mxu0 0.0
        %485 = vmatpush1.msra.mxu0 %v458
        %486 = vmatprep.subr.mxu0 0.0
        %487 = vmatpush1.msra.mxu0 %v459
        %488 = vmatprep.subr.mxu0 0.0
        %489 = vmatpush1.msra.mxu0 %v460
        %490 = vmatprep.subr.mxu0 0.0
        %491 = vmatpush1.msra.mxu0 %v461
        %492 = vmatprep.subr.mxu0 0.0
        %493 = vmatpush1.msra.mxu0 %v462
        %494 = vmatprep.subr.mxu0 0.0
        %495 = vmatpush1.msra.mxu0 %v463
        %496 = vmatprep.subr.mxu0 0.0
        %497 = vmatpush1.msra.mxu0 0.0
        %498 = vmatprep.subr.mxu0 0.0
        %499 = vmatpush1.msra.mxu0 0.0
        %500 = vmatprep.subr.mxu0 0.0
        %501 = vmatpush1.msra.mxu0 0.0
        %502 = vmatprep.subr.mxu0 0.0
        %503 = vmatpush1.msra.mxu0 0.0
        %504 = vmatprep.subr.mxu0 0.0
        %505 = vmatpush1.msra.mxu0 0.0
        %506 = vmatprep.subr.mxu0 0.0
        %507 = vmatpush1.msra.mxu0 0.0
        %508 = vmatprep.subr.mxu0 0.0
        %509 = vmatpush1.msra.mxu0 0.0
        %510 = vmatprep.subr.mxu0 0.0
        %511 = vmatpush1.msra.mxu0 0.0
        %512 = vmatprep.subr.mxu0 0.0
        %513 = vmatpush1.msra.mxu0 0.0
        %514 = vmatprep.subr.mxu0 0.0
        %515 = vmatpush1.msra.mxu0 0.0
        %516 = vmatprep.subr.mxu0 0.0
        %517 = vmatpush1.msra.mxu0 0.0
        %518 = vmatprep.subr.mxu0 0.0
        %519 = vmatpush1.msra.mxu0 0.0
        %520 = vmatprep.subr.mxu0 0.0
        %521 = vmatpush1.msra.mxu0 0.0
        %522 = vmatprep.subr.mxu0 0.0
        %523 = vmatpush1.msra.mxu0 0.0
        %524 = vmatprep.subr.mxu0 0.0
        %525 = vmatpush1.msra.mxu0 0.0
        %526 = vmatprep.subr.mxu0 0.0
        %527 = vmatpush1.msra.mxu0 0.0
        %528 = vmatprep.mubr.f32.mxu0 0.0
        %529 = vmatmul.mubr.f32.gmra.mrb[0].mxu0 %v446
        %v530 = vpop.f32.mrb[0].mxu0
        %v531 = vadd.f32 0.0, %v530
        %v532 = vpop.f32.mrb[0].mxu0
        %533 = vmatprep.mubr.f32.mxu0 0.0
        %534 = vmatmul.mubr.f32.gmra.mrb[0].mxu0 %v447
        %v535 = vpop.f32.mrb[0].mxu0
        %v536 = vadd.f32 0.0, %v535
        %v537 = vpop.f32.mrb[0].mxu0
        %538 = vdwg.mxu0
        %p539 = scmp.eq.s32.totalorder %s30, 0
        // Predicated region
        $region53: #{feed_forward.1} parent=39 // pred_check
          %p540 = pneg %p539
        $region54: #{feed_forward.1} parent=39 // pred_check_branch
          %542 = sbr.rel (%p540) target = $region56
        $region55: #{feed_forward.1} parent=39 // pred_region
          %543 = vst [vmem:[%s330] sm:$0xff] %v531
          %544 = vst [vmem:[%s330 + $0x8] sm:$0xff] %v536
        $region56: #{feed_forward.1} parent=39 // pred_fallthru
          _
        %p545 = scmp.gt.s32.totalorder %s30, 0
        // Predicated region
        $region57: #{feed_forward.1} parent=39 // pred_check
          %p546 = pneg %p545
        $region58: #{feed_forward.1} parent=39 // pred_check_branch
          %548 = sbr.rel (%p546) target = $region60
        $region59: #{feed_forward.1} parent=39 // pred_region
          %v549 = vld [vmem:[%s330] sm:$0xff]
          %v550 = vld [vmem:[%s330 + $0x8] sm:$0xff]
          %v551 = vadd.f32 %v549, %v531
          %v552 = vadd.f32 %v550, %v536
          %553 = vst [vmem:[%s330] sm:$0xff] %v551
          %554 = vst [vmem:[%s330 + $0x8] sm:$0xff] %v552
        $region60: #{feed_forward.1} parent=39 // pred_fallthru
          _
        %p555 = scmp.eq.s32.totalorder %s30, 1
        // Predicated region
        $region61: #{feed_forward.1} parent=39 // pred_check
          %p556 = pneg %p555
        $region62: #{feed_forward.1} parent=39 // pred_check_branch
          %558 = sbr.rel (%p556) target = $region64
        $region63: #{feed_forward.1} parent=39 // pred_region
          %v559 = vld [vmem:[%s330] sm:$0xff]
          %v560 = vld [vmem:[%s330 + $0x8] sm:$0xff]
          %v561 = vld [vmem:[%s4] sm:$0x1]
          %v563 = vlaneseq
          %v564 = vshrl.u32 %v563, 7
          %v565 = vsub.s32 0, %v564
          %v566 = vrot.slane %v561, %v565
          %v568 = vadd.f32 %v559, %v566
          %v569 = vadd.f32 %v560, %v566
          %570 = vst [vmem:[%s330] sm:$0xff] %v568
          %571 = vst [vmem:[%s330 + $0x8] sm:$0xff] %v569
        $region64: #{feed_forward.1} parent=39 // pred_fallthru
          _
        %s572 = sand.u32 %s165, 1
        %s573 = scalar_lea.sflag [#allocation4], %s572
        %s574 = sand.u32 %s165, 1
        %s575 = smul.addr %s574, 16
        %s576 = scalar_lea.vmem [#allocation8], %s575
        // Predicated region
        $region65: #{feed_forward.1} parent=39 // pred_check
          %p577 = pneg %p175
        $region66: #{feed_forward.1} parent=39 // pred_check_branch
          %579 = sbr.rel (%p577) target = $region68
        $region67: #{feed_forward.1} parent=39 // pred_region
          %s580 = smul.u32 2, %s29
          %s582 = ssub.s32 256, 256
          %583 = vsyncadd %s573, %s582
          %s584 = smul.addr %s580, 128
          %s585 = scalar_lea.hbm %s5, %s584
          %s586 = sshll.u32 %s576, 4
          %s587 = int_to_ptr.vmem [resolvable:$true] %s586
          %592 = dma.vmem_to_hbm [thread:$0]  %s587, 256, %s585, %s573, 128, 128, 8
        $region68: #{feed_forward.1} parent=39 // pred_fallthru
          _
      $region40: #{feed_forward.1} parent=5 // pred_fallthru
        _
      %p593 = scmp.le.s32.totalorder 2, %s20
      // Predicated region
      $region69: #{feed_forward.1} parent=5 // pred_check
        %p594 = pneg %p593
      $region70: #{feed_forward.1} parent=5 // pred_check_branch
        %596 = sbr.rel (%p594) target = $region72
      $region71: #{feed_forward.1} parent=5 // pred_region
        %s597 = ssub.s32 %s20, 2
        // Predicated region
        $region73: #{feed_forward.1} parent=71 // pred_check
          %p598 = pneg %p181
        $region74: #{feed_forward.1} parent=71 // pred_check_branch
          %600 = sbr.rel (%p598) target = $region76
        $region75: #{feed_forward.1} parent=71 // pred_region
          %s601 = sand.u32 %s166, 1
          %s602 = scalar_lea.sflag [#allocation4], %s601
          %s603 = sand.u32 %s166, 1
          %s604 = smul.addr %s603, 16
          %s605 = scalar_lea.vmem [#allocation8], %s604
          %606 = dma.done %s602, 256
        $region76: #{feed_forward.1} parent=71 // pred_fallthru
          _
      $region72: #{feed_forward.1} parent=5 // pred_fallthru
        _
    $region6: #{feed_forward.1} parent=1 // loop_footer
      %s24 = sadd.s32 1, %s20
    $region7: #{feed_forward.1} parent=1 // loop_footer_branch
      %19 = sbr.rel target = $region3
    $region8: #{feed_forward.1} parent=1 // loop_exit
      _
    %607 = vsyncpa [#allocation3], 1
    %s608 = scalar_lea.sflag [#allocation3], 1
    %609 = vsyncpa %s608, 1
    %610 = vsyncpa [#allocation6], 1
    %s611 = scalar_lea.sflag [#allocation6], 1
    %612 = vsyncpa %s611, 1
    %613 = vsyncpa [#allocation4], 1
    %s614 = scalar_lea.sflag [#allocation4], 1
    %615 = vsyncpa %s614, 1

</llo_original>
